<compile_context>
chip_gen: v5e
topology: v5e:2x2
jax: 0.10.0
libtpu: 0.0.40
codegen_flags: <defaults>
</compile_context>

<pallas_src>
import functools

import jax
import jax.numpy as jnp
from jax.experimental import pallas as pl
from jax.experimental.pallas import tpu as pltpu


def _round_up(x, m):
    return (x + m - 1) // m * m


def _mb_trainer_kernel(n_valid, tb, d_other, d_att,
                       other_ref, att_ref, mask_ref, lbl_ref,
                       w1_ref, b1_ref, w2_ref, b2_ref,
                       loss_ref, feat_ref, acc_ref):
    b = pl.program_id(0)

    @pl.when(b == 0)
    def _():
        acc_ref[...] = jnp.zeros_like(acc_ref)

    # ---- masked mean pooling over attention features (f32 accumulation) ----
    att = att_ref[...].astype(jnp.float32)                      # [TB, L, D_att]
    mask = mask_ref[...].astype(jnp.float32)                    # [TB, L]
    msum = jnp.maximum(jnp.sum(mask, axis=1, keepdims=True), 1.0)
    att_pool = jnp.sum(att * mask[:, :, None], axis=1) / msum   # [TB, D_att]

    # ---- assemble concatenated feature row [TB, D_cat] in VMEM scratch ----
    # columns: [ fc | seq_pool | src_pool | att_pool ] (matches w1_cat rows)
    feat_ref[:, pl.ds(0, d_other)] = other_ref[...].astype(jnp.float32)
    feat_ref[:, pl.ds(d_other, d_att)] = att_pool

    # ---- 2-layer MLP head: single K-fused MXU matmul + VPU/XLU reduce ----
    h = jnp.dot(feat_ref[...], w1_ref[...],
                preferred_element_type=jnp.float32) + b1_ref[...]        # [TB, H]
    h = jnp.maximum(h, 0.0)
    logits = jnp.sum(h * w2_ref[...], axis=-1, keepdims=True) + b2_ref[...]  # [TB, 1]

    # ---- Huber loss (delta = 1.0); mask padded batch rows of the last tile ----
    diff = logits - lbl_ref[...]
    absd = jnp.abs(diff)
    elem = jnp.where(absd < 1.0, 0.5 * diff * diff, absd - 0.5)
    row = b * tb + jax.lax.broadcasted_iota(jnp.int32, (tb, 1), 0)
    elem = jnp.where(row < n_valid, elem, 0.0)

    acc_ref[...] += jnp.sum(elem, axis=0, keepdims=True)        # (1, 1) carry

    @pl.when(b == pl.num_programs(0) - 1)
    def _():
        loss_ref[...] = acc_ref[...] / n_valid                  # single store


def mb_trainer_forward(fc_feats, att_feats, seq_greedy, src_x, att_masks,
                       better_labels, params, *,
                       vmem_budget_bytes=40 * 1024 * 1024):
    """Returns scalar Huber loss, matching MBTrainer.forward semantics."""
    B, L, d_att = att_feats.shape
    emb = params["emb"]
    H = params["w1_fc"].shape[1]

    # Glue: data-dependent embedding gather + tiny T-mean pooling stay in JAX;
    # only [B, D_emb] pooled rows are DMA'd into the kernel.
    seq_pool = jnp.mean(jnp.take(emb, seq_greedy, axis=0), axis=1)   # [B, D_emb]
    src_pool = jnp.mean(jnp.take(emb, src_x, axis=0), axis=1)        # [B, D_emb]

    other = jnp.concatenate(
        [fc_feats.astype(jnp.float32), seq_pool, src_pool], axis=-1)  # [B, D_other]
    d_other = other.shape[1]
    d_cat = d_other + d_att

    # Fuse W1 once in the wrapper; row order matches the in-kernel feature concat.
    w1_cat = jnp.concatenate(
        [params["w1_fc"], params["w1_seq"], params["w1_src"], params["w1_att"]],
        axis=0).astype(jnp.float32)                                   # [D_cat, H]
    b1 = params["b1"].reshape(1, H).astype(jnp.float32)
    w2_row = params["w2"].reshape(1, H).astype(jnp.float32)           # lane-dense row
    b2 = params["b2"].reshape(1, 1).astype(jnp.float32)

    labels = better_labels.reshape(B, 1).astype(jnp.float32)
    masks = att_masks.astype(jnp.float32)

    # Batch tile: biggest multiple of 8 whose double-buffered att tile fits the
    # VMEM budget (budget chosen so the kernel also fits v7x's 64 MiB / TC).
    att_row_bytes = L * d_att * jnp.dtype(att_feats.dtype).itemsize
    tb = max(8, (vmem_budget_bytes // max(1, 2 * att_row_bytes)) // 8 * 8)
    tb = min(tb, 512, _round_up(B, 8))
    b_pad = _round_up(B, tb)

    def pad_b(x):
        if b_pad == B:
            return x
        return jnp.pad(x, ((0, b_pad - B),) + ((0, 0),) * (x.ndim - 1))

    other_p, att_p, mask_p, lbl_p = map(pad_b, (other, att_feats, masks, labels))

    kernel = functools.partial(_mb_trainer_kernel, B, tb, d_other, d_att)

    loss = pl.pallas_call(
        kernel,
        out_shape=jax.ShapeDtypeStruct((1, 1), jnp.float32),
        grid=(b_pad // tb,),
        in_specs=[
            pl.BlockSpec((tb, d_other), lambda b: (b, 0)),       # fc|seq|src pooled
            pl.BlockSpec((tb, L, d_att), lambda b: (b, 0, 0)),   # att_feats (bf16 ok)
            pl.BlockSpec((tb, L), lambda b: (b, 0)),             # att_masks
            pl.BlockSpec((tb, 1), lambda b: (b, 0)),             # labels
            pl.BlockSpec((d_cat, H), lambda b: (0, 0)),          # fused W1 (resident)
            pl.BlockSpec((1, H), lambda b: (0, 0)),              # b1
            pl.BlockSpec((1, H), lambda b: (0, 0)),              # w2 row
            pl.BlockSpec((1, 1), lambda b: (0, 0)),              # b2
        ],
        out_specs=pl.BlockSpec((1, 1), lambda b: (0, 0)),
        scratch_shapes=[
            pltpu.VMEM((tb, d_cat), jnp.float32),   # concatenated feature row
            pltpu.VMEM((1, 1), jnp.float32),        # running Huber sum
        ],
        # Batch axis carries the loss accumulator -> "arbitrary".
        # TODO(synk): for v7x megacore, emit per-tile partial sums instead and
        # mark this axis "parallel", reducing the partials in the wrapper.
        compiler_params=pltpu.CompilerParams(
            dimension_semantics=("arbitrary",),
            vmem_limit_bytes=48 * 1024 * 1024),
    )(other_p, att_p, mask_p, lbl_p, w1_cat, b1, w2_row, b2)
    return loss[0, 0]


def _reference_forward(fc_feats, att_feats, seq_greedy, src_x, att_masks,
                       better_labels, params):
    emb = params["emb"]
    seq_pool = jnp.mean(jnp.take(emb, seq_greedy, axis=0), axis=1)
    src_pool = jnp.mean(jnp.take(emb, src_x, axis=0), axis=1)
    att = att_feats.astype(jnp.float32)
    m = att_masks.astype(jnp.float32)
    msum = jnp.maximum(jnp.sum(m, axis=1, keepdims=True), 1.0)
    att_pool = jnp.sum(att * m[:, :, None], axis=1) / msum
    h = (fc_feats.astype(jnp.float32) @ params["w1_fc"]
         + att_pool @ params["w1_att"]
         + seq_pool @ params["w1_seq"]
         + src_pool @ params["w1_src"] + params["b1"])
    h = jnp.maximum(h, 0.0)
    logits = (h @ params["w2"] + params["b2"])[:, 0]
    diff = logits - better_labels
    absd = jnp.abs(diff)
    elem = jnp.where(absd < 1.0, 0.5 * diff * diff, absd - 0.5)
    return jnp.mean(elem)


if __name__ == "__main__":
    key = jax.random.PRNGKey(0)
    B, L, T = 2, 16, 8
    D_fc, D_att, D_emb, H, VOCAB = 32, 32, 32, 32, 50

    keys = jax.random.split(key, 12)
    fc_feats = jax.random.normal(keys[0], (B, D_fc), jnp.float32)
    # att_feats kept in its native bf16 -> half the HBM->VMEM DMA bytes.
    att_feats = jax.random.normal(keys[1], (B, L, D_att), jnp.float32).astype(jnp.bfloat16)
    seq_greedy = jax.random.randint(keys[2], (B, T), 0, VOCAB, jnp.int32)
    src_x = jax.random.randint(keys[3], (B, T), 0, VOCAB, jnp.int32)
    att_masks = (jax.random.uniform(keys[4], (B, L)) > 0.3).astype(jnp.float32)
    better_labels = jax.random.bernoulli(keys[5], 0.5, (B,)).astype(jnp.float32)

    params = {
        "emb":    0.02 * jax.random.normal(keys[6], (VOCAB, D_emb), jnp.float32),
        "w1_fc":  0.05 * jax.random.normal(keys[7], (D_fc, H), jnp.float32),
        "w1_att": 0.05 * jax.random.normal(keys[8], (D_att, H), jnp.float32),
        "w1_seq": 0.05 * jax.random.normal(keys[9], (D_emb, H), jnp.float32),
        "w1_src": 0.05 * jax.random.normal(keys[10], (D_emb, H), jnp.float32),
        "b1":     jnp.zeros((1, H), jnp.float32),
        "w2":     0.05 * jax.random.normal(keys[11], (H, 1), jnp.float32),
        "b2":     jnp.zeros((1, 1), jnp.float32),
    }

    loss = mb_trainer_forward(fc_feats, att_feats, seq_greedy, src_x,
                              att_masks, better_labels, params)
    jax.block_until_ready(loss)

    ref = _reference_forward(fc_feats, att_feats, seq_greedy, src_x,
                             att_masks, better_labels, params)
    assert jnp.allclose(loss, ref, atol=1e-4, rtol=1e-4), (loss, ref)
    print("KERNEL_OK")
</pallas_src>

<mosaic_0001>
module attributes {stable_mosaic.version = 11 : i64} {
  func.func @_mb_trainer_kernel(%arg0: i32, %arg1: memref<8x96xf32, #tpu.memory_space<vmem>>, %arg2: memref<8x16x32xbf16, #tpu.memory_space<vmem>>, %arg3: memref<8x16xf32, #tpu.memory_space<vmem>>, %arg4: memref<8x1xf32, #tpu.memory_space<vmem>>, %arg5: memref<128x32xf32, #tpu.memory_space<vmem>>, %arg6: memref<1x32xf32, #tpu.memory_space<vmem>>, %arg7: memref<1x32xf32, #tpu.memory_space<vmem>>, %arg8: memref<1x1xf32, #tpu.memory_space<vmem>>, %arg9: memref<1x1xf32, #tpu.memory_space<vmem>>, %arg10: memref<8x128xf32, #tpu.memory_space<vmem>>, %arg11: memref<1x1xf32, #tpu.memory_space<vmem>>) attributes {dimension_semantics = [#tpu.dimension_semantics<arbitrary>], iteration_bounds = array<i64: 1>, scalar_prefetch = 0 : i64, scratch_operands = 2 : i64, tpu.core_type = #tpu.core_type<tc>, window_params = [{transform_indices = @transform_0, window_bounds = array<i64: 8, 96>}, {transform_indices = @transform_1, window_bounds = array<i64: 8, 16, 32>}, {transform_indices = @transform_2, window_bounds = array<i64: 8, 16>}, {transform_indices = @transform_3, window_bounds = array<i64: 8, 1>}, {pipeline_mode = #tpu.pipeline_mode<synchronous>, transform_indices = @transform_4, window_bounds = array<i64: 128, 32>}, {pipeline_mode = #tpu.pipeline_mode<synchronous>, transform_indices = @transform_5, window_bounds = array<i64: 1, 32>}, {pipeline_mode = #tpu.pipeline_mode<synchronous>, transform_indices = @transform_6, window_bounds = array<i64: 1, 32>}, {pipeline_mode = #tpu.pipeline_mode<synchronous>, transform_indices = @transform_7, window_bounds = array<i64: 1, 1>}, {pipeline_mode = #tpu.pipeline_mode<synchronous>, transform_indices = @transform_8, window_bounds = array<i64: 1, 1>}]} {
    %c0_i32 = arith.constant 0 : i32
    %0 = arith.cmpi eq, %arg0, %c0_i32 : i32
    %1 = arith.extui %0 : i1 to i32
    %c0_i32_0 = arith.constant 0 : i32
    %2 = arith.cmpi ne, %1, %c0_i32_0 : i32
    scf.if %2 {
      %cst_38 = arith.constant 0.000000e+00 : f32
      %62 = vector.broadcast %cst_38 : f32 to vector<1x1xf32>
      %c0_39 = arith.constant 0 : index
      %c0_40 = arith.constant 0 : index
      %63 = vector.load %arg11[%c0_39, %c0_40] : memref<1x1xf32, #tpu.memory_space<vmem>>, vector<1x1xf32>
      tpu.vector_store %arg11[%c0_39, %c0_40], %62 {strides = array<i32>} : memref<1x1xf32, #tpu.memory_space<vmem>>, vector<1x1xf32>,
    } else {
    }
    %c0 = arith.constant 0 : index
    %c0_1 = arith.constant 0 : index
    %c0_2 = arith.constant 0 : index
    %3 = vector.load %arg2[%c0, %c0_1, %c0_2] : memref<8x16x32xbf16, #tpu.memory_space<vmem>>, vector<8x16x32xbf16>
    %4 = arith.extf %3 : vector<8x16x32xbf16> to vector<8x16x32xf32>
    %c0_3 = arith.constant 0 : index
    %c0_4 = arith.constant 0 : index
    %5 = vector.load %arg3[%c0_3, %c0_4] : memref<8x16xf32, #tpu.memory_space<vmem>>, vector<8x16xf32>
    %cst = arith.constant dense<0.000000e+00> : vector<8xf32>
    %6 = vector.multi_reduction <add>, %5, %cst [1] : vector<8x16xf32> to vector<8xf32>
    %7 = vector.shape_cast %6 : vector<8xf32> to vector<8x1xf32>
    %cst_5 = arith.constant 1.000000e+00 : f32
    %8 = vector.broadcast %cst_5 : f32 to vector<8x1xf32>
    %9 = arith.maximumf %7, %8 : vector<8x1xf32>
    %10 = vector.shape_cast %5 : vector<8x16xf32> to vector<8x16x1xf32>
    %11 = vector.broadcast %10 : vector<8x16x1xf32> to vector<8x16x32xf32>
    %12 = arith.mulf %4, %11 : vector<8x16x32xf32>
    %cst_6 = arith.constant dense<0.000000e+00> : vector<8x32xf32>
    %13 = vector.multi_reduction <add>, %12, %cst_6 [1] : vector<8x16x32xf32> to vector<8x32xf32>
    %14 = vector.broadcast %9 : vector<8x1xf32> to vector<8x32xf32>
    %15 = arith.divf %13, %14 : vector<8x32xf32>
    %c0_7 = arith.constant 0 : index
    %c0_8 = arith.constant 0 : index
    %16 = vector.load %arg1[%c0_7, %c0_8] : memref<8x96xf32, #tpu.memory_space<vmem>>, vector<8x96xf32>
    %c0_9 = arith.constant 0 : index
    %c0_10 = arith.constant 0 : index
    %17 = vector.load %arg10[%c0_9, %c0_10] : memref<8x128xf32, #tpu.memory_space<vmem>>, vector<8x96xf32>
    tpu.vector_store %arg10[%c0_9, %c0_10], %16 {strides = array<i32>} : memref<8x128xf32, #tpu.memory_space<vmem>>, vector<8x96xf32>,
    %c0_11 = arith.constant 0 : index
    %c96 = arith.constant 96 : index
    %18 = vector.load %arg10[%c0_11, %c96] : memref<8x128xf32, #tpu.memory_space<vmem>>, vector<8x32xf32>
    tpu.vector_store %arg10[%c0_11, %c96], %15 {strides = array<i32>} : memref<8x128xf32, #tpu.memory_space<vmem>>, vector<8x32xf32>,
    %c0_12 = arith.constant 0 : index
    %c0_13 = arith.constant 0 : index
    %19 = vector.load %arg10[%c0_12, %c0_13] : memref<8x128xf32, #tpu.memory_space<vmem>>, vector<8x128xf32>
    %c0_14 = arith.constant 0 : index
    %c0_15 = arith.constant 0 : index
    %20 = vector.load %arg5[%c0_14, %c0_15] : memref<128x32xf32, #tpu.memory_space<vmem>>, vector<128x32xf32>
    %cst_16 = arith.constant dense<0.000000e+00> : vector<8x32xf32>
    %21 = tpu.matmul %19, %20, %cst_16 {dimension_numbers = #tpu.dot_dimension_numbers<[1], [0], [0], [1], [0, 0, 1, 1], [], []>} : vector<8x128xf32>, vector<128x32xf32>, vector<8x32xf32> -> vector<8x32xf32>
    %c0_17 = arith.constant 0 : index
    %c0_18 = arith.constant 0 : index
    %22 = vector.load %arg6[%c0_17, %c0_18] : memref<1x32xf32, #tpu.memory_space<vmem>>, vector<1x32xf32>
    %23 = vector.broadcast %22 : vector<1x32xf32> to vector<8x32xf32>
    %24 = arith.addf %21, %23 : vector<8x32xf32>
    %cst_19 = arith.constant 0.000000e+00 : f32
    %25 = vector.broadcast %cst_19 : f32 to vector<8x32xf32>
    %26 = arith.maximumf %24, %25 : vector<8x32xf32>
    %c0_20 = arith.constant 0 : index
    %c0_21 = arith.constant 0 : index
    %27 = vector.load %arg7[%c0_20, %c0_21] : memref<1x32xf32, #tpu.memory_space<vmem>>, vector<1x32xf32>
    %28 = vector.broadcast %27 : vector<1x32xf32> to vector<8x32xf32>
    %29 = arith.mulf %26, %28 : vector<8x32xf32>
    %cst_22 = arith.constant dense<0.000000e+00> : vector<8xf32>
    %30 = vector.multi_reduction <add>, %29, %cst_22 [1] : vector<8x32xf32> to vector<8xf32>
    %31 = vector.shape_cast %30 : vector<8xf32> to vector<8x1xf32>
    %c0_23 = arith.constant 0 : index
    %c0_24 = arith.constant 0 : index
    %32 = vector.load %arg8[%c0_23, %c0_24] : memref<1x1xf32, #tpu.memory_space<vmem>>, vector<1x1xf32>
    %33 = vector.broadcast %32 : vector<1x1xf32> to vector<8x1xf32>
    %34 = arith.addf %31, %33 : vector<8x1xf32>
    %c0_25 = arith.constant 0 : index
    %c0_26 = arith.constant 0 : index
    %35 = vector.load %arg4[%c0_25, %c0_26] : memref<8x1xf32, #tpu.memory_space<vmem>>, vector<8x1xf32>
    %36 = arith.subf %34, %35 : vector<8x1xf32>
    %37 = math.absf %36 : vector<8x1xf32>
    %cst_27 = arith.constant 1.000000e+00 : f32
    %38 = vector.broadcast %cst_27 : f32 to vector<8x1xf32>
    %39 = arith.cmpf olt, %37, %38 : vector<8x1xf32>
    %cst_28 = arith.constant 5.000000e-01 : f32
    %40 = vector.broadcast %cst_28 : f32 to vector<8x1xf32>
    %41 = arith.mulf %40, %36 : vector<8x1xf32>
    %42 = arith.mulf %41, %36 : vector<8x1xf32>
    %cst_29 = arith.constant 5.000000e-01 : f32
    %43 = vector.broadcast %cst_29 : f32 to vector<8x1xf32>
    %44 = arith.subf %37, %43 : vector<8x1xf32>
    %45 = arith.select %39, %42, %44 : vector<8x1xi1>, vector<8x1xf32>
    %c8_i32 = arith.constant 8 : i32
    %46 = arith.muli %arg0, %c8_i32 : i32
    %47 = tpu.iota {dimensions = array<i32: 0>} : vector<8x1xi32>
    %48 = vector.broadcast %46 : i32 to vector<8x1xi32>
    %49 = arith.addi %48, %47 : vector<8x1xi32>
    %c2_i32 = arith.constant 2 : i32
    %50 = vector.broadcast %c2_i32 : i32 to vector<8x1xi32>
    %51 = arith.cmpi slt, %49, %50 : vector<8x1xi32>
    %cst_30 = arith.constant 0.000000e+00 : f32
    %52 = vector.broadcast %cst_30 : f32 to vector<8x1xf32>
    %53 = arith.select %51, %45, %52 : vector<8x1xi1>, vector<8x1xf32>
    %c0_31 = arith.constant 0 : index
    %c0_32 = arith.constant 0 : index
    %54 = vector.load %arg11[%c0_31, %c0_32] : memref<1x1xf32, #tpu.memory_space<vmem>>, vector<1x1xf32>
    %cst_33 = arith.constant dense<0.000000e+00> : vector<1xf32>
    %55 = vector.multi_reduction <add>, %53, %cst_33 [0] : vector<8x1xf32> to vector<1xf32>
    %56 = vector.shape_cast %55 : vector<1xf32> to vector<1x1xf32>
    %57 = arith.addf %54, %56 : vector<1x1xf32>
    %c0_34 = arith.constant 0 : index
    %c0_35 = arith.constant 0 : index
    %58 = vector.load %arg11[%c0_34, %c0_35] : memref<1x1xf32, #tpu.memory_space<vmem>>, vector<1x1xf32>
    tpu.vector_store %arg11[%c0_34, %c0_35], %57 {strides = array<i32>} : memref<1x1xf32, #tpu.memory_space<vmem>>, vector<1x1xf32>,
    %c0_i32_36 = arith.constant 0 : i32
    %59 = arith.cmpi eq, %arg0, %c0_i32_36 : i32
    %60 = arith.extui %59 : i1 to i32
    %c0_i32_37 = arith.constant 0 : i32
    %61 = arith.cmpi ne, %60, %c0_i32_37 : i32
    scf.if %61 {
      %c0_38 = arith.constant 0 : index
      %c0_39 = arith.constant 0 : index
      %62 = vector.load %arg11[%c0_38, %c0_39] : memref<1x1xf32, #tpu.memory_space<vmem>>, vector<1x1xf32>
      %cst_40 = arith.constant 2.000000e+00 : f32
      %63 = vector.broadcast %cst_40 : f32 to vector<1x1xf32>
      %64 = arith.divf %62, %63 : vector<1x1xf32>
      %c0_41 = arith.constant 0 : index
      %c0_42 = arith.constant 0 : index
      %65 = vector.load %arg9[%c0_41, %c0_42] : memref<1x1xf32, #tpu.memory_space<vmem>>, vector<1x1xf32>
      tpu.vector_store %arg9[%c0_41, %c0_42], %64 {strides = array<i32>} : memref<1x1xf32, #tpu.memory_space<vmem>>, vector<1x1xf32>,
    } else {
    }
    return
  }
  func.func @transform_0(%arg0: i32) -> (i32, i32) {
    %c0_i32 = arith.constant 0 : i32
    %c0_i32_0 = arith.constant 0 : i32
    return %arg0, %c0_i32 : i32, i32
  }
  func.func @transform_1(%arg0: i32) -> (i32, i32, i32) {
    %c0_i32 = arith.constant 0 : i32
    %c0_i32_0 = arith.constant 0 : i32
    %c0_i32_1 = arith.constant 0 : i32
    return %arg0, %c0_i32, %c0_i32_0 : i32, i32, i32
  }
  func.func @transform_2(%arg0: i32) -> (i32, i32) {
    %c0_i32 = arith.constant 0 : i32
    %c0_i32_0 = arith.constant 0 : i32
    return %arg0, %c0_i32 : i32, i32
  }
  func.func @transform_3(%arg0: i32) -> (i32, i32) {
    %c0_i32 = arith.constant 0 : i32
    %c0_i32_0 = arith.constant 0 : i32
    return %arg0, %c0_i32 : i32, i32
  }
  func.func @transform_4(%arg0: i32) -> (i32, i32) {
    %c0_i32 = arith.constant 0 : i32
    %c0_i32_0 = arith.constant 0 : i32
    %c0_i32_1 = arith.constant 0 : i32
    return %c0_i32, %c0_i32_0 : i32, i32
  }
  func.func @transform_5(%arg0: i32) -> (i32, i32) {
    %c0_i32 = arith.constant 0 : i32
    %c0_i32_0 = arith.constant 0 : i32
    %c0_i32_1 = arith.constant 0 : i32
    return %c0_i32, %c0_i32_0 : i32, i32
  }
  func.func @transform_6(%arg0: i32) -> (i32, i32) {
    %c0_i32 = arith.constant 0 : i32
    %c0_i32_0 = arith.constant 0 : i32
    %c0_i32_1 = arith.constant 0 : i32
    return %c0_i32, %c0_i32_0 : i32, i32
  }
  func.func @transform_7(%arg0: i32) -> (i32, i32) {
    %c0_i32 = arith.constant 0 : i32
    %c0_i32_0 = arith.constant 0 : i32
    %c0_i32_1 = arith.constant 0 : i32
    return %c0_i32, %c0_i32_0 : i32, i32
  }
  func.func @transform_8(%arg0: i32) -> (i32, i32) {
    %c0_i32 = arith.constant 0 : i32
    %c0_i32_0 = arith.constant 0 : i32
    %c0_i32_1 = arith.constant 0 : i32
    return %c0_i32, %c0_i32_0 : i32, i32
  }
}

</mosaic_0001>

<llo_original>
// kernel: tpu_custom_call.1
$region0: #{tpu_custom_call.1}
  #allocation0 [shape = 'u32[]', space=smem, size = 0x4, offset = 0x4, fixed_abs, tag = 'smem constant byte address 0x4 - core index']
  #allocation1 [shape = 'u32[72,128]{1,0:T(1,128)}', space=vmem, size = 0x9000, scoped, tag = 'internal scratch']
  #allocation2 [shape = 'f32[8,128]{1,0:T(8,128)}', space=vmem, size = 0x1000, scoped, tag = 'scratch operand']
  #allocation3 [shape = 'f32[1,1]{1,0:T(1,128)}', space=vmem, size = 0x200, scoped, tag = 'scratch operand']
  #allocation4 [shape = 'f32[1,1]{1,0:T(1,128)S(1)}', space=vmem, size = 0x200, scoped, tag = 'scoped memory for tpu_custom_call.1']
  %s0 = inlined_call_operand.vmem [shape: f32[8,96], index: 0, kind: input, shape index: {}]
  %s1 = inlined_call_operand.vmem [shape: bf16[8,16,32], index: 1, kind: input, shape index: {}]
  %s2 = inlined_call_operand.vmem [shape: f32[8,16], index: 2, kind: input, shape index: {}]
  %s3 = inlined_call_operand.vmem [shape: f32[8,1], index: 3, kind: input, shape index: {}]
  %s4 = inlined_call_operand.vmem [shape: f32[128,32], index: 4, kind: input, shape index: {}]
  %s5 = inlined_call_operand.vmem [shape: f32[1,32], index: 5, kind: input, shape index: {}]
  %s6 = inlined_call_operand.vmem [shape: f32[1,32], index: 6, kind: input, shape index: {}]
  %s7 = inlined_call_operand.<no memory space> [shape: f32[1,1], index: 7, kind: input, shape index: {}]
  %s8 = inlined_call_operand.hbm [shape: f32[1,1], index: 8, kind: output, shape index: {}]
  %s9 = sld [smem:[#allocation0]]
  $region50: #{tpu_custom_call.1} parent=0
    _
  %s11 = ssub.s32 1, %s9
  %s12 = scalar_select 0, %s11, %s9
  %v13 = vstv %s7
  %14 = vst [vmem:[#allocation4] sm:$0x1] %v13
  $region1: #{tpu_custom_call.1} parent=0
    #allocation5 [shape = 'u8[512]{0}', space=vmem, size = 0x400, scoped, tag = 'output window, operand 0, single buffered']
    #allocation6 [shape = 's32[1]{0}', space=sflag, size = 0x4, scoped, tag = 'scoped memory for tpu_custom_call.1']
    %15 = vsyncpa [#allocation6], 0
    // Predicated region
    $region2: #{tpu_custom_call.1} parent=1 // pred_check
      _
    $region3: #{tpu_custom_call.1} parent=1 // pred_check_branch
      %17 = sbr.rel (0) target = $region5
    $region4: #{tpu_custom_call.1} parent=1 // pred_region
      _
    $region5: #{tpu_custom_call.1} parent=1 // pred_fallthru
      _
    // Predicated region
    $region6: #{tpu_custom_call.1} parent=1 // pred_check
      _
    $region7: #{tpu_custom_call.1} parent=1 // pred_check_branch
      %19 = sbr.rel (0) target = $region9
    $region8: #{tpu_custom_call.1} parent=1 // pred_region
      _
    $region9: #{tpu_custom_call.1} parent=1 // pred_fallthru
      _
    // Predicated region
    $region10: #{tpu_custom_call.1} parent=1 // pred_check
      _
    $region11: #{tpu_custom_call.1} parent=1 // pred_check_branch
      %21 = sbr.rel (0) target = $region13
    $region12: #{tpu_custom_call.1} parent=1 // pred_region
      _
    $region13: #{tpu_custom_call.1} parent=1 // pred_fallthru
      _
    // Predicated region
    $region14: #{tpu_custom_call.1} parent=1 // pred_check
      _
    $region15: #{tpu_custom_call.1} parent=1 // pred_check_branch
      %23 = sbr.rel (0) target = $region17
    $region16: #{tpu_custom_call.1} parent=1 // pred_region
      _
    $region17: #{tpu_custom_call.1} parent=1 // pred_fallthru
      _
    // Predicated region
    $region18: #{tpu_custom_call.1} parent=1 // pred_check
      _
    $region19: #{tpu_custom_call.1} parent=1 // pred_check_branch
      %25 = sbr.rel (0) target = $region21
    $region20: #{tpu_custom_call.1} parent=1 // pred_region
      _
    $region21: #{tpu_custom_call.1} parent=1 // pred_fallthru
      _
    // Predicated region
    $region22: #{tpu_custom_call.1} parent=1 // pred_check
      _
    $region23: #{tpu_custom_call.1} parent=1 // pred_check_branch
      %27 = sbr.rel (0) target = $region25
    $region24: #{tpu_custom_call.1} parent=1 // pred_region
      _
    $region25: #{tpu_custom_call.1} parent=1 // pred_fallthru
      _
    // Predicated region
    $region26: #{tpu_custom_call.1} parent=1 // pred_check
      _
    $region27: #{tpu_custom_call.1} parent=1 // pred_check_branch
      %29 = sbr.rel (0) target = $region29
    $region28: #{tpu_custom_call.1} parent=1 // pred_region
      _
    $region29: #{tpu_custom_call.1} parent=1 // pred_fallthru
      _
    // Predicated region
    $region30: #{tpu_custom_call.1} parent=1 // pred_check
      _
    $region31: #{tpu_custom_call.1} parent=1 // pred_check_branch
      %31 = sbr.rel (0) target = $region33
    $region32: #{tpu_custom_call.1} parent=1 // pred_region
      _
    $region33: #{tpu_custom_call.1} parent=1 // pred_fallthru
      _
    %p32 = scmp.eq.s32.totalorder 0, 0
    // Predicated region
    $region34: #{tpu_custom_call.1} parent=1 // pred_check
      %p33 = pneg %p32
    $region35: #{tpu_custom_call.1} parent=1 // pred_check_branch
      %35 = sbr.rel (%p33) target = $region37
    $region36: #{tpu_custom_call.1} parent=1 // pred_region
      %vm36 = vcmask 0
      %37 = vst.msk [vmem:[#allocation3] sm:$0x1] %vm36, 0.0
    $region37: #{tpu_custom_call.1} parent=1 // pred_fallthru
      _
    %v38 = vld [vmem:[%s1] sm:$0xf]
    %v39 = vld [vmem:[%s1 + $0x4] sm:$0xf]
    %v40 = vld [vmem:[%s1 + $0x8] sm:$0xf]
    %v41 = vld [vmem:[%s1 + $0xc] sm:$0xf]
    %v42 = vld [vmem:[%s1 + $0x10] sm:$0xf]
    %v43 = vld [vmem:[%s1 + $0x14] sm:$0xf]
    %v44 = vld [vmem:[%s1 + $0x18] sm:$0xf]
    %v45 = vld [vmem:[%s1 + $0x1c] sm:$0xf]
    %v46 = vld [vmem:[%s1 + $0x20] sm:$0xf]
    %v47 = vld [vmem:[%s1 + $0x24] sm:$0xf]
    %v48 = vld [vmem:[%s1 + $0x28] sm:$0xf]
    %v49 = vld [vmem:[%s1 + $0x2c] sm:$0xf]
    %v50 = vld [vmem:[%s1 + $0x30] sm:$0xf]
    %v51 = vld [vmem:[%s1 + $0x34] sm:$0xf]
    %v52 = vld [vmem:[%s1 + $0x38] sm:$0xf]
    %v53 = vld [vmem:[%s1 + $0x3c] sm:$0xf]
    %v54 = vunpack.c.l.bf16 %v38
    %v55 = vunpack.c.l.bf16 %v39
    %v56 = vunpack.c.l.bf16 %v40
    %v57 = vunpack.c.l.bf16 %v41
    %v58 = vunpack.c.l.bf16 %v42
    %v59 = vunpack.c.l.bf16 %v43
    %v60 = vunpack.c.l.bf16 %v44
    %v61 = vunpack.c.l.bf16 %v45
    %v62 = vunpack.c.l.bf16 %v46
    %v63 = vunpack.c.l.bf16 %v47
    %v64 = vunpack.c.l.bf16 %v48
    %v65 = vunpack.c.l.bf16 %v49
    %v66 = vunpack.c.l.bf16 %v50
    %v67 = vunpack.c.l.bf16 %v51
    %v68 = vunpack.c.l.bf16 %v52
    %v69 = vunpack.c.l.bf16 %v53
    %v70 = vld [vmem:[%s2] sm:$0xff]
    %vm71 = vcmask 130048
    %v72 = vsel %vm71, %v70, 0.0
    %73 = vadd.xlane.f32.xlu0 %v72
    %v74 = vpop.xlane.xlu0 %73
    %v75 = vmax.f32 %v74, 1.0
    %v76 = vperm.slane %v70, 0
    %v77 = vlaneseq
    %v78 = vshrl.u32 %v77, 7
    %80 = vset.pattern.permute.xlu0 %v78
    %81 = vperm.xlu0 %80, %v76
    %v82 = vpop.permute.xlu0 %81
    %v83 = vlaneseq
    %v84 = vshrl.u32 %v83, 7
    %v85 = vadd.s32 %v84, 8
    %86 = vset.pattern.permute.xlu0 %v85
    %87 = vperm.xlu0 %86, %v76
    %v88 = vpop.permute.xlu0 %87
    %v89 = vperm.slane %v70, 1
    %v90 = vlaneseq
    %v91 = vshrl.u32 %v90, 7
    %93 = vset.pattern.permute.xlu0 %v91
    %94 = vperm.xlu0 %93, %v89
    %v95 = vpop.permute.xlu0 %94
    %v96 = vlaneseq
    %v97 = vshrl.u32 %v96, 7
    %v98 = vadd.s32 %v97, 8
    %99 = vset.pattern.permute.xlu0 %v98
    %100 = vperm.xlu0 %99, %v89
    %v101 = vpop.permute.xlu0 %100
    %v102 = vperm.slane %v70, 2
    %v103 = vlaneseq
    %v104 = vshrl.u32 %v103, 7
    %106 = vset.pattern.permute.xlu0 %v104
    %107 = vperm.xlu0 %106, %v102
    %v108 = vpop.permute.xlu0 %107
    %v109 = vlaneseq
    %v110 = vshrl.u32 %v109, 7
    %v111 = vadd.s32 %v110, 8
    %112 = vset.pattern.permute.xlu0 %v111
    %113 = vperm.xlu0 %112, %v102
    %v114 = vpop.permute.xlu0 %113
    %v115 = vperm.slane %v70, 3
    %v116 = vlaneseq
    %v117 = vshrl.u32 %v116, 7
    %119 = vset.pattern.permute.xlu0 %v117
    %120 = vperm.xlu0 %119, %v115
    %v121 = vpop.permute.xlu0 %120
    %v122 = vlaneseq
    %v123 = vshrl.u32 %v122, 7
    %v124 = vadd.s32 %v123, 8
    %125 = vset.pattern.permute.xlu0 %v124
    %126 = vperm.xlu0 %125, %v115
    %v127 = vpop.permute.xlu0 %126
    %v128 = vperm.slane %v70, 4
    %v129 = vlaneseq
    %v130 = vshrl.u32 %v129, 7
    %132 = vset.pattern.permute.xlu0 %v130
    %133 = vperm.xlu0 %132, %v128
    %v134 = vpop.permute.xlu0 %133
    %v135 = vlaneseq
    %v136 = vshrl.u32 %v135, 7
    %v137 = vadd.s32 %v136, 8
    %138 = vset.pattern.permute.xlu0 %v137
    %139 = vperm.xlu0 %138, %v128
    %v140 = vpop.permute.xlu0 %139
    %v141 = vperm.slane %v70, 5
    %v142 = vlaneseq
    %v143 = vshrl.u32 %v142, 7
    %145 = vset.pattern.permute.xlu0 %v143
    %146 = vperm.xlu0 %145, %v141
    %v147 = vpop.permute.xlu0 %146
    %v148 = vlaneseq
    %v149 = vshrl.u32 %v148, 7
    %v150 = vadd.s32 %v149, 8
    %151 = vset.pattern.permute.xlu0 %v150
    %152 = vperm.xlu0 %151, %v141
    %v153 = vpop.permute.xlu0 %152
    %v154 = vperm.slane %v70, 6
    %v155 = vlaneseq
    %v156 = vshrl.u32 %v155, 7
    %158 = vset.pattern.permute.xlu0 %v156
    %159 = vperm.xlu0 %158, %v154
    %v160 = vpop.permute.xlu0 %159
    %v161 = vlaneseq
    %v162 = vshrl.u32 %v161, 7
    %v163 = vadd.s32 %v162, 8
    %164 = vset.pattern.permute.xlu0 %v163
    %165 = vperm.xlu0 %164, %v154
    %v166 = vpop.permute.xlu0 %165
    %v167 = vperm.slane %v70, 7
    %v168 = vlaneseq
    %v169 = vshrl.u32 %v168, 7
    %171 = vset.pattern.permute.xlu0 %v169
    %172 = vperm.xlu0 %171, %v167
    %v173 = vpop.permute.xlu0 %172
    %v174 = vlaneseq
    %v175 = vshrl.u32 %v174, 7
    %v176 = vadd.s32 %v175, 8
    %177 = vset.pattern.permute.xlu0 %v176
    %178 = vperm.xlu0 %177, %v167
    %v179 = vpop.permute.xlu0 %178
    %v180 = vmul.f32 %v54, %v82
    %v181 = vmul.f32 %v55, %v88
    %v182 = vmul.f32 %v56, %v95
    %v183 = vmul.f32 %v57, %v101
    %v184 = vmul.f32 %v58, %v108
    %v185 = vmul.f32 %v59, %v114
    %v186 = vmul.f32 %v60, %v121
    %v187 = vmul.f32 %v61, %v127
    %v188 = vmul.f32 %v62, %v134
    %v189 = vmul.f32 %v63, %v140
    %v190 = vmul.f32 %v64, %v147
    %v191 = vmul.f32 %v65, %v153
    %v192 = vmul.f32 %v66, %v160
    %v193 = vmul.f32 %v67, %v166
    %v194 = vmul.f32 %v68, %v173
    %v195 = vmul.f32 %v69, %v179
    %vm196 = vcmask 261120
    %v197 = vsel %vm196, %v180, 0.0
    %v198 = vsel %vm196, %v181, 0.0
    %v199 = vadd.f32 %v197, %v198
    %v200 = vrot.slane %v199, 4
    %v201 = vadd.f32 %v199, %v200
    %v202 = vrot.slane %v201, 2
    %v203 = vadd.f32 %v201, %v202
    %v204 = vrot.slane %v203, 1
    %v205 = vadd.f32 %v203, %v204
    %v206 = vsel %vm196, %v182, 0.0
    %v207 = vsel %vm196, %v183, 0.0
    %v208 = vadd.f32 %v206, %v207
    %v209 = vrot.slane %v208, 4
    %v210 = vadd.f32 %v208, %v209
    %v211 = vrot.slane %v210, 2
    %v212 = vadd.f32 %v210, %v211
    %v213 = vrot.slane %v212, 1
    %v214 = vadd.f32 %v212, %v213
    %v215 = vsel %vm196, %v184, 0.0
    %v216 = vsel %vm196, %v185, 0.0
    %v217 = vadd.f32 %v215, %v216
    %v218 = vrot.slane %v217, 4
    %v219 = vadd.f32 %v217, %v218
    %v220 = vrot.slane %v219, 2
    %v221 = vadd.f32 %v219, %v220
    %v222 = vrot.slane %v221, 1
    %v223 = vadd.f32 %v221, %v222
    %v224 = vsel %vm196, %v186, 0.0
    %v225 = vsel %vm196, %v187, 0.0
    %v226 = vadd.f32 %v224, %v225
    %v227 = vrot.slane %v226, 4
    %v228 = vadd.f32 %v226, %v227
    %v229 = vrot.slane %v228, 2
    %v230 = vadd.f32 %v228, %v229
    %v231 = vrot.slane %v230, 1
    %v232 = vadd.f32 %v230, %v231
    %v233 = vsel %vm196, %v188, 0.0
    %v234 = vsel %vm196, %v189, 0.0
    %v235 = vadd.f32 %v233, %v234
    %v236 = vrot.slane %v235, 4
    %v237 = vadd.f32 %v235, %v236
    %v238 = vrot.slane %v237, 2
    %v239 = vadd.f32 %v237, %v238
    %v240 = vrot.slane %v239, 1
    %v241 = vadd.f32 %v239, %v240
    %v242 = vsel %vm196, %v190, 0.0
    %v243 = vsel %vm196, %v191, 0.0
    %v244 = vadd.f32 %v242, %v243
    %v245 = vrot.slane %v244, 4
    %v246 = vadd.f32 %v244, %v245
    %v247 = vrot.slane %v246, 2
    %v248 = vadd.f32 %v246, %v247
    %v249 = vrot.slane %v248, 1
    %v250 = vadd.f32 %v248, %v249
    %v251 = vsel %vm196, %v192, 0.0
    %v252 = vsel %vm196, %v193, 0.0
    %v253 = vadd.f32 %v251, %v252
    %v254 = vrot.slane %v253, 4
    %v255 = vadd.f32 %v253, %v254
    %v256 = vrot.slane %v255, 2
    %v257 = vadd.f32 %v255, %v256
    %v258 = vrot.slane %v257, 1
    %v259 = vadd.f32 %v257, %v258
    %v260 = vsel %vm196, %v194, 0.0
    %v261 = vsel %vm196, %v195, 0.0
    %v262 = vadd.f32 %v260, %v261
    %v263 = vrot.slane %v262, 4
    %v264 = vadd.f32 %v262, %v263
    %v265 = vrot.slane %v264, 2
    %v266 = vadd.f32 %v264, %v265
    %v267 = vrot.slane %v266, 1
    %v268 = vadd.f32 %v266, %v267
    %v270 = vrot.slane %v75, 1
    %v271 = vrot.slane %v75, 2
    %v272 = vrot.slane %v75, 3
    %v273 = vrot.slane %v75, 4
    %v274 = vrot.slane %v75, 5
    %v275 = vrot.slane %v75, 6
    %v276 = vrot.slane %v75, 7
    %v285 = vrcp.pop %v75
    %v286 = vmul.f32 %v75, %v285
    %v287 = vsub.f32 1.0, %v286
    %v288 = vmul.f32 %v285, %v287
    %v289 = vadd.f32 %v285, %v288
    %vm290 = vweird.f32 %v75
    %vm291 = vweird.f32 %v285
    %vm292 = vmor %vm290, %vm291
    %v293 = vsel %vm292, %v285, %v289
    %v294 = vand.u32 2147483647, %v75
    %vm295 = vcmp.eq.f32.partialorder %v294, 8.507059e+37
    %v296 = vand.u32 %v75, 2147483648
    %v297 = vor.u32 1.1754944e-38, %v296
    %v298 = vsel %vm295, %v297, %v293
    %v299 = vmul.f32 %v205, %v298
    %v300 = vrcp.pop %v270
    %v301 = vmul.f32 %v270, %v300
    %v302 = vsub.f32 1.0, %v301
    %v303 = vmul.f32 %v300, %v302
    %v304 = vadd.f32 %v300, %v303
    %vm305 = vweird.f32 %v270
    %vm306 = vweird.f32 %v300
    %vm307 = vmor %vm305, %vm306
    %v308 = vsel %vm307, %v300, %v304
    %v309 = vand.u32 2147483647, %v270
    %vm310 = vcmp.eq.f32.partialorder %v309, 8.507059e+37
    %v311 = vand.u32 %v270, 2147483648
    %v312 = vor.u32 1.1754944e-38, %v311
    %v313 = vsel %vm310, %v312, %v308
    %v314 = vmul.f32 %v214, %v313
    %v315 = vrcp.pop %v271
    %v316 = vmul.f32 %v271, %v315
    %v317 = vsub.f32 1.0, %v316
    %v318 = vmul.f32 %v315, %v317
    %v319 = vadd.f32 %v315, %v318
    %vm320 = vweird.f32 %v271
    %vm321 = vweird.f32 %v315
    %vm322 = vmor %vm320, %vm321
    %v323 = vsel %vm322, %v315, %v319
    %v324 = vand.u32 2147483647, %v271
    %vm325 = vcmp.eq.f32.partialorder %v324, 8.507059e+37
    %v326 = vand.u32 %v271, 2147483648
    %v327 = vor.u32 1.1754944e-38, %v326
    %v328 = vsel %vm325, %v327, %v323
    %v329 = vmul.f32 %v223, %v328
    %v330 = vrcp.pop %v272
    %v331 = vmul.f32 %v272, %v330
    %v332 = vsub.f32 1.0, %v331
    %v333 = vmul.f32 %v330, %v332
    %v334 = vadd.f32 %v330, %v333
    %vm335 = vweird.f32 %v272
    %vm336 = vweird.f32 %v330
    %vm337 = vmor %vm335, %vm336
    %v338 = vsel %vm337, %v330, %v334
    %v339 = vand.u32 2147483647, %v272
    %vm340 = vcmp.eq.f32.partialorder %v339, 8.507059e+37
    %v341 = vand.u32 %v272, 2147483648
    %v342 = vor.u32 1.1754944e-38, %v341
    %v343 = vsel %vm340, %v342, %v338
    %v344 = vmul.f32 %v232, %v343
    %v345 = vrcp.pop %v273
    %v346 = vmul.f32 %v273, %v345
    %v347 = vsub.f32 1.0, %v346
    %v348 = vmul.f32 %v345, %v347
    %v349 = vadd.f32 %v345, %v348
    %vm350 = vweird.f32 %v273
    %vm351 = vweird.f32 %v345
    %vm352 = vmor %vm350, %vm351
    %v353 = vsel %vm352, %v345, %v349
    %v354 = vand.u32 2147483647, %v273
    %vm355 = vcmp.eq.f32.partialorder %v354, 8.507059e+37
    %v356 = vand.u32 %v273, 2147483648
    %v357 = vor.u32 1.1754944e-38, %v356
    %v358 = vsel %vm355, %v357, %v353
    %v359 = vmul.f32 %v241, %v358
    %v360 = vrcp.pop %v274
    %v361 = vmul.f32 %v274, %v360
    %v362 = vsub.f32 1.0, %v361
    %v363 = vmul.f32 %v360, %v362
    %v364 = vadd.f32 %v360, %v363
    %vm365 = vweird.f32 %v274
    %vm366 = vweird.f32 %v360
    %vm367 = vmor %vm365, %vm366
    %v368 = vsel %vm367, %v360, %v364
    %v369 = vand.u32 2147483647, %v274
    %vm370 = vcmp.eq.f32.partialorder %v369, 8.507059e+37
    %v371 = vand.u32 %v274, 2147483648
    %v372 = vor.u32 1.1754944e-38, %v371
    %v373 = vsel %vm370, %v372, %v368
    %v374 = vmul.f32 %v250, %v373
    %v375 = vrcp.pop %v275
    %v376 = vmul.f32 %v275, %v375
    %v377 = vsub.f32 1.0, %v376
    %v378 = vmul.f32 %v375, %v377
    %v379 = vadd.f32 %v375, %v378
    %vm380 = vweird.f32 %v275
    %vm381 = vweird.f32 %v375
    %vm382 = vmor %vm380, %vm381
    %v383 = vsel %vm382, %v375, %v379
    %v384 = vand.u32 2147483647, %v275
    %vm385 = vcmp.eq.f32.partialorder %v384, 8.507059e+37
    %v386 = vand.u32 %v275, 2147483648
    %v387 = vor.u32 1.1754944e-38, %v386
    %v388 = vsel %vm385, %v387, %v383
    %v389 = vmul.f32 %v259, %v388
    %v390 = vrcp.pop %v276
    %v391 = vmul.f32 %v276, %v390
    %v392 = vsub.f32 1.0, %v391
    %v393 = vmul.f32 %v390, %v392
    %v394 = vadd.f32 %v390, %v393
    %vm395 = vweird.f32 %v276
    %vm396 = vweird.f32 %v390
    %vm397 = vmor %vm395, %vm396
    %v398 = vsel %vm397, %v390, %v394
    %v399 = vand.u32 2147483647, %v276
    %vm400 = vcmp.eq.f32.partialorder %v399, 8.507059e+37
    %v401 = vand.u32 %v276, 2147483648
    %v402 = vor.u32 1.1754944e-38, %v401
    %v403 = vsel %vm400, %v402, %v398
    %v404 = vmul.f32 %v268, %v403
    %v405 = vld [vmem:[%s0] sm:$0xff]
    %vm406 = vcmask 785408
    %407 = vst.msk [vmem:[#allocation2] sm:$0xff] %vm406, %v405
    %v416 = vrot.slane %v314, 7
    %vm417 = vcmask 1041409
    %v418 = vsel %vm417, %v416, %v299
    %v419 = vrot.slane %v329, 6
    %vm420 = vcmask 1042434
    %v421 = vsel %vm420, %v419, %v418
    %v422 = vrot.slane %v344, 5
    %vm423 = vcmask 1043459
    %v424 = vsel %vm423, %v422, %v421
    %v425 = vrot.slane %v359, 4
    %vm426 = vcmask 1044484
    %v427 = vsel %vm426, %v425, %v424
    %v428 = vrot.slane %v374, 3
    %vm429 = vcmask 1045509
    %v430 = vsel %vm429, %v428, %v427
    %v431 = vrot.slane %v389, 2
    %vm432 = vcmask 1046534
    %v433 = vsel %vm432, %v431, %v430
    %v434 = vrot.slane %v404, 1
    %vm435 = vcmask 1047559
    %v436 = vsel %vm435, %v434, %v433
    %437 = vrot.lane.b32.xlu0 %v436, 96
    %v438 = vpop.permute.xlu0 %437
    %vm440 = vcmask 1048320
    %441 = vst.msk [vmem:[#allocation2] sm:$0xff] %vm440, %v438
    %v442 = vld [vmem:[#allocation2] sm:$0xff]
    %v443 = vld [vmem:[%s4] sm:$0xff]
    %v444 = vld [vmem:[%s4 + $0x8] sm:$0xff]
    %v445 = vld [vmem:[%s4 + $0x10] sm:$0xff]
    %v446 = vld [vmem:[%s4 + $0x18] sm:$0xff]
    %v447 = vld [vmem:[%s4 + $0x20] sm:$0xff]
    %v448 = vld [vmem:[%s4 + $0x28] sm:$0xff]
    %v449 = vld [vmem:[%s4 + $0x30] sm:$0xff]
    %v450 = vld [vmem:[%s4 + $0x38] sm:$0xff]
    %v451 = vld [vmem:[%s4 + $0x40] sm:$0xff]
    %v452 = vld [vmem:[%s4 + $0x48] sm:$0xff]
    %v453 = vld [vmem:[%s4 + $0x50] sm:$0xff]
    %v454 = vld [vmem:[%s4 + $0x58] sm:$0xff]
    %v455 = vld [vmem:[%s4 + $0x60] sm:$0xff]
    %v456 = vld [vmem:[%s4 + $0x68] sm:$0xff]
    %v457 = vld [vmem:[%s4 + $0x70] sm:$0xff]
    %v458 = vld [vmem:[%s4 + $0x78] sm:$0xff]
    %v459 = vld [vmem:[%s5] sm:$0x1]
    %v461 = vperm.slane %v459, 0
    %463 = vmatpush.msra.mxu0 %v458
    %464 = vmatpush.msra.mxu0 %v457
    %465 = vmatpush.msra.mxu0 %v456
    %466 = vmatpush.msra.mxu0 %v455
    %467 = vmatpush.msra.mxu0 %v454
    %468 = vmatpush.msra.mxu0 %v453
    %469 = vmatpush.msra.mxu0 %v452
    %470 = vmatpush.msra.mxu0 %v451
    %471 = vmatpush.msra.mxu0 %v450
    %472 = vmatpush.msra.mxu0 %v449
    %473 = vmatpush.msra.mxu0 %v448
    %474 = vmatpush.msra.mxu0 %v447
    %475 = vmatpush.msra.mxu0 %v446
    %476 = vmatpush.msra.mxu0 %v445
    %477 = vmatpush.msra.mxu0 %v444
    %478 = vmatpush.msra.mxu0 %v443
    %479 = vmatmul.f32.gmra.mxu0 %v442
    %v480 = vpop.f32.mrf.mxu0
    %v481 = vadd.f32 %v461, %v480
    %482 = vdwg.mxu0
    %v483 = vmax.f32 %v481, 0.0
    %v484 = vld [vmem:[%s6] sm:$0x1]
    %v486 = vperm.slane %v484, 0
    %v488 = vmul.f32 %v483, %v486
    %v489 = vsel %vm196, %v488, 0.0
    %490 = vadd.xlane.f32.xlu0 %v489
    %v491 = vpop.xlane.xlu0 %490
    %v492 = vld [vmem:[#allocation4] sm:$0x1]
    %v494 = vperm.slane %v492, 0
    %v496 = vadd.f32 %v491, %v494
    %v497 = vld [vmem:[%s3] sm:$0xff]
    %v498 = vsub.f32 %v496, %v497
    %v499 = vand.u32 2147483647, %v498
    %vm500 = vcmp.lt.f32.partialorder %v499, 1.0
    %v501 = vmul.f32 %v498, 0.5
    %v502 = vmul.f32 %v501, %v498
    %v503 = vsub.f32 %v499, 0.5
    %v504 = vsel %vm500, %v502, %v503
    %s505 = smul.u32 0, 8
    %v506 = vlaneseq
    %v507 = vshrl.u32 %v506, 7
    %v508 = vstv %s505
    %v509 = vadd.s32 %v508, %v507
    %vm510 = vcmp.lt.s32.totalorder %v509, 2
    %v511 = vsel %vm510, %v504, 0.0
    %v512 = vld [vmem:[#allocation3] sm:$0x1]
    %vm513 = vcmask 7168
    %v514 = vsel %vm513, %v511, 0.0
    %v515 = vrot.slane %v514, 4
    %v516 = vadd.f32 %v514, %v515
    %v517 = vrot.slane %v516, 2
    %v518 = vadd.f32 %v516, %v517
    %v519 = vrot.slane %v518, 1
    %v520 = vadd.f32 %v518, %v519
    %v521 = vadd.f32 %v512, %v520
    %vm522 = vcmask 0
    %523 = vst.msk [vmem:[#allocation3] sm:$0x1] %vm522, %v521
    // Predicated region
    $region38: #{tpu_custom_call.1} parent=1 // pred_check
      %p524 = pneg %p32
    $region39: #{tpu_custom_call.1} parent=1 // pred_check_branch
      %526 = sbr.rel (%p524) target = $region41
    $region40: #{tpu_custom_call.1} parent=1 // pred_region
      %v527 = vld [vmem:[#allocation3] sm:$0x1]
      %v528 = vrcp.pop 2.0
      %v529 = vmul.f32 2.0, %v528
      %v530 = vsub.f32 1.0, %v529
      %v531 = vmul.f32 %v528, %v530
      %v532 = vadd.f32 %v528, %v531
      %vm533 = vweird.f32 %v528
      %v534 = vsel %vm533, %v528, %v532
      %v535 = vmul.f32 %v527, %v534
      %536 = vst.msk [vmem:[#allocation5] sm:$0x1] %vm522, %v535
    $region41: #{tpu_custom_call.1} parent=1 // pred_fallthru
      _
    // Predicated region
    $region42: #{tpu_custom_call.1} parent=1 // pred_check
      _
    $region43: #{tpu_custom_call.1} parent=1 // pred_check_branch
      %538 = sbr.rel (0) target = $region45
    $region44: #{tpu_custom_call.1} parent=1 // pred_region
      %540 = vsyncadd [#allocation6], 0
      %s542 = sshll.u32 [#allocation5], 4
      %s543 = int_to_ptr.vmem [resolvable:$true] %s542
      %s544 = sshll.u32 %s8, 4
      %s545 = int_to_ptr.hbm [resolvable:$true] %s544
      %547 = dma.vmem_to_hbm [thread:$0]  %s543, 16, %s545, [#allocation6]
    $region45: #{tpu_custom_call.1} parent=1 // pred_fallthru
      _
    // Predicated region
    $region46: #{tpu_custom_call.1} parent=1 // pred_check
      _
    $region47: #{tpu_custom_call.1} parent=1 // pred_check_branch
      %549 = sbr.rel (0) target = $region49
    $region48: #{tpu_custom_call.1} parent=1 // pred_region
      %551 = dma.done [#allocation6], 16
    $region49: #{tpu_custom_call.1} parent=1 // pred_fallthru
      _
    %552 = vsyncpa [#allocation6], 1

</llo_original>
